<compile_context>
chip_gen: v6e
topology: v6e:2x2x1
jax: 0.10.0
libtpu: 0.0.40
codegen_flags: <defaults>
</compile_context>

<pallas_src>
import functools

import jax
import jax.numpy as jnp
from jax.experimental import pallas as pl
from jax.experimental.pallas import tpu as pltpu

LANE = 128


def _round_up(x, m):
    return ((x + m - 1) // m) * m


def _vmem_budget():
    """(tile budget bytes, Mosaic vmem_limit_bytes), generation-aware."""
    cap = 64 * 1024 * 1024  # conservative default = v7x physical VMEM
    try:
        cap = int(pltpu.get_tpu_info().vmem_capacity_bytes)
    except Exception:
        pass
    # 128 MiB parts (v5e/v6e) -> 48 MiB budget / 96 MiB limit
    #  64 MiB parts (v7x)     -> 24 MiB budget / 48 MiB limit
    return (cap * 3) // 8, (cap * 3) // 4


def _choose_tile_rows(rows, c, itemsize, budget_bytes, max_rows=512):
    """Largest row-tile (rows of 128 pixels) that fits the VMEM budget."""
    # Per row of 128 pixels:
    #   double-buffered logits block     : 2 * C * 128 * itemsize
    #   live (C,*)-sized f32 temporaries : ~6 * C * 128 * 4
    #       (x, x - m, exp(x - m), class iota, select result, slack)
    #   per-pixel (1,*) values           : ~12 * 128 * 4
    #       (m, sumexp, picked, loss, mask, targets x2, output, ...)
    per_row = 2 * c * LANE * itemsize + 6 * c * LANE * 4 + 12 * LANE * 4
    tr = max(1, budget_bytes // per_row)
    if tr >= rows or rows <= 8:
        return rows                      # full extent — always a legal block
    tr = min(tr, max_rows)
    return max(8, (tr // 8) * 8)         # sublane-aligned tile


def _ce2d_kernel(logits_ref, targets_ref, out_ref, *,
                 hw, tile_rows, j_inner, j_total, need_mask):
    # logits_ref : (1, C, TR, 128)  raw logits, C on a leading untiled axis
    # targets_ref: (1, 1, TR, 128)  int32 class ids
    # out_ref    : (1, 1, TR, 128)  f32 per-pixel partial-sum accumulator,
    #                               resident across the innermost grid axis.
    g = pl.program_id(1)
    j = pl.program_id(2)

    @pl.when(j == 0)
    def _():
        out_ref[...] = jnp.zeros_like(out_ref)

    x = logits_ref[...].astype(jnp.float32)                   # (1, C, TR, 128)
    m = jnp.max(x, axis=1, keepdims=True)                     # (1, 1, TR, 128)
    sumexp = jnp.sum(jnp.exp(x - m), axis=1, keepdims=True)   # (1, 1, TR, 128)

    t = targets_ref[...]                                      # (1, 1, TR, 128)
    cls = jax.lax.broadcasted_iota(jnp.int32, x.shape, 1)     # (1, C, TR, 128)
    # Gather x[t] from the *raw* logits (keeps the select path independent of
    # the max pass and leaves (x - m) with a single consumer: exp).
    picked = jnp.sum(jnp.where(cls == t, x, 0.0),
                     axis=1, keepdims=True)                   # (1, 1, TR, 128)

    # -log_softmax(x)[t] = log(sum(exp(x - m))) + m - x[t]
    loss = jnp.log(sumexp) + m - picked                       # (1, 1, TR, 128)

    if need_mask:
        chunk = g * j_inner + j
        last = j_total - 1

        @pl.when(chunk < last)
        def _():
            out_ref[...] += loss

        @pl.when(chunk >= last)
        def _():
            # Mask pixels past the end of the image (padded lanes, partial
            # edge rows, or clamped duplicate overflow chunks).  Keep this a
            # select: padded lanes can hold garbage/Inf.
            row = jax.lax.broadcasted_iota(jnp.int32, loss.shape, 2)
            lane = jax.lax.broadcasted_iota(jnp.int32, loss.shape, 3)
            pix = (chunk * tile_rows + row) * LANE + lane
            out_ref[...] += jnp.where(pix < hw, loss, 0.0)
    else:
        out_ref[...] += loss


def cross_entropy_loss_2d(outputs, targets, *, tile_rows=None,
                          parallel_chunks=1):
    """outputs: (N, C, H, W) float logits; targets: (N, H, W) int labels.

    Returns the scalar mean NLL over all N*H*W pixels — identical semantics to
    nn.NLLLoss()(F.log_softmax(outputs, dim=1), targets).

    parallel_chunks: keep 1 on single-TensorCore parts (v5e/v6e).  On v7x set
    to 2 only when N alone cannot feed both TensorCores (N == 1 or odd).
    """
    N, C, H, W = outputs.shape
    HW = H * W
    P = N * HW

    HW_pad = _round_up(HW, LANE)
    logits = outputs.reshape(N, C, HW)
    tgt = targets.reshape(N, 1, HW).astype(jnp.int32)
    if HW_pad != HW:
        pad = HW_pad - HW
        logits = jnp.pad(logits, ((0, 0), (0, 0), (0, pad)))
        tgt = jnp.pad(tgt, ((0, 0), (0, 0), (0, pad)))

    R = HW_pad // LANE
    logits = logits.reshape(N, C, R, LANE)
    tgt = tgt.reshape(N, 1, R, LANE)

    budget_bytes, vmem_limit = _vmem_budget()
    if tile_rows is None:
        tile_rows = _choose_tile_rows(R, C, outputs.dtype.itemsize,
                                      budget_bytes)
    TR = tile_rows

    J = -(-R // TR)                         # row chunks per image
    G = max(1, min(parallel_chunks, J))     # parallel chunk groups
    Jin = -(-J // G)                        # sequential chunks per group

    # Masking is needed iff the covered pixel count exceeds HW (lane padding,
    # partial edge row-tile) or clamped overflow chunks exist.
    need_mask = (J * TR * LANE != HW) or (G * Jin != J)

    def in_map(n, g, j):
        # Clamp so overflow steps of the last group re-read a valid chunk
        # (their contribution is masked to zero inside the kernel).
        return (n, 0, jnp.minimum(g * Jin + j, J - 1), 0)

    def out_map(n, g, j):
        return (n * G + g, 0, 0, 0)

    kernel = functools.partial(
        _ce2d_kernel, hw=HW, tile_rows=TR, j_inner=Jin, j_total=J,
        need_mask=need_mask)

    partial = pl.pallas_call(
        kernel,
        out_shape=jax.ShapeDtypeStruct((N * G, 1, TR, LANE), jnp.float32),
        grid_spec=pltpu.PrefetchScalarGridSpec(
            num_scalar_prefetch=0,
            grid=(N, G, Jin),
            in_specs=[
                pl.BlockSpec((1, C, TR, LANE), in_map),
                pl.BlockSpec((1, 1, TR, LANE), in_map),
            ],
            out_specs=pl.BlockSpec((1, 1, TR, LANE), out_map),
        ),
        compiler_params=pltpu.CompilerParams(
            dimension_semantics=("parallel", "parallel", "arbitrary"),
            vmem_limit_bytes=vmem_limit,
        ),
    )(logits, tgt)

    # Single cross-lane reduction, done once in the wrapper (cheap:
    # N*G*TR*128 f32 values) — also improves summation accuracy.
    return jnp.sum(partial) / jnp.float32(P)


def _reference(outputs, targets):
    logp = jax.nn.log_softmax(outputs.astype(jnp.float32), axis=1)  # (N,C,H,W)
    picked = jnp.take_along_axis(logp, targets[:, None, :, :], axis=1)[:, 0]
    return -jnp.mean(picked)


if __name__ == "__main__":
    key = jax.random.PRNGKey(0)
    k1, k2 = jax.random.split(key)

    N, C, H, W = 2, 4, 16, 16
    outputs = jax.random.normal(k1, (N, C, H, W), dtype=jnp.float32)
    targets = jax.random.randint(k2, (N, H, W), 0, C, dtype=jnp.int32)

    loss = cross_entropy_loss_2d(outputs, targets)
    jax.block_until_ready(loss)

    ref = _reference(outputs, targets)
    assert jnp.allclose(loss, ref, rtol=1e-5, atol=1e-5), (loss, ref)

    print("KERNEL_OK")
</pallas_src>

<mosaic_0001>
module attributes {stable_mosaic.version = 11 : i64} {
  func.func @_ce2d_kernel(%arg0: i32, %arg1: i32, %arg2: i32, %arg3: memref<1x4x2x128xf32, #tpu.memory_space<vmem>>, %arg4: memref<1x1x2x128xi32, #tpu.memory_space<vmem>>, %arg5: memref<1x1x2x128xf32, #tpu.memory_space<vmem>>) attributes {dimension_semantics = [#tpu.dimension_semantics<parallel>, #tpu.dimension_semantics<parallel>, #tpu.dimension_semantics<arbitrary>], iteration_bounds = array<i64: 2, 1, 1>, scalar_prefetch = 0 : i64, scratch_operands = 0 : i64, tpu.core_type = #tpu.core_type<tc>, window_params = [{transform_indices = @transform_0, window_bounds = array<i64: 1, 4, 2, 128>}, {transform_indices = @transform_1, window_bounds = array<i64: 1, 1, 2, 128>}, {transform_indices = @transform_2, window_bounds = array<i64: 1, 1, 2, 128>}]} {
    %c0_i32 = arith.constant 0 : i32
    %0 = arith.cmpi eq, %arg2, %c0_i32 : i32
    %1 = arith.extui %0 : i1 to i32
    %c0_i32_0 = arith.constant 0 : i32
    %2 = arith.cmpi ne, %1, %c0_i32_0 : i32
    scf.if %2 {
      %cst_19 = arith.constant 0.000000e+00 : f32
      %25 = vector.broadcast %cst_19 : f32 to vector<1x1x2x128xf32>
      %c0_20 = arith.constant 0 : index
      %c0_21 = arith.constant 0 : index
      %c0_22 = arith.constant 0 : index
      %c0_23 = arith.constant 0 : index
      %26 = vector.load %arg5[%c0_20, %c0_21, %c0_22, %c0_23] : memref<1x1x2x128xf32, #tpu.memory_space<vmem>>, vector<1x1x2x128xf32>
      tpu.vector_store %arg5[%c0_20, %c0_21, %c0_22, %c0_23], %25 {strides = array<i32>} : memref<1x1x2x128xf32, #tpu.memory_space<vmem>>, vector<1x1x2x128xf32>,
    } else {
    }
    %c0 = arith.constant 0 : index
    %c0_1 = arith.constant 0 : index
    %c0_2 = arith.constant 0 : index
    %c0_3 = arith.constant 0 : index
    %3 = vector.load %arg3[%c0, %c0_1, %c0_2, %c0_3] : memref<1x4x2x128xf32, #tpu.memory_space<vmem>>, vector<1x4x2x128xf32>
    %cst = arith.constant dense<0xFF800000> : vector<1x2x128xf32>
    %4 = vector.multi_reduction <maximumf>, %3, %cst [1] : vector<1x4x2x128xf32> to vector<1x2x128xf32>
    %5 = vector.shape_cast %4 : vector<1x2x128xf32> to vector<1x1x2x128xf32>
    %6 = vector.broadcast %5 : vector<1x1x2x128xf32> to vector<1x4x2x128xf32>
    %7 = arith.subf %3, %6 : vector<1x4x2x128xf32>
    %8 = math.exp %7 : vector<1x4x2x128xf32>
    %cst_4 = arith.constant dense<0.000000e+00> : vector<1x2x128xf32>
    %9 = vector.multi_reduction <add>, %8, %cst_4 [1] : vector<1x4x2x128xf32> to vector<1x2x128xf32>
    %10 = vector.shape_cast %9 : vector<1x2x128xf32> to vector<1x1x2x128xf32>
    %c0_5 = arith.constant 0 : index
    %c0_6 = arith.constant 0 : index
    %c0_7 = arith.constant 0 : index
    %c0_8 = arith.constant 0 : index
    %11 = vector.load %arg4[%c0_5, %c0_6, %c0_7, %c0_8] : memref<1x1x2x128xi32, #tpu.memory_space<vmem>>, vector<1x1x2x128xi32>
    %12 = tpu.iota {dimensions = array<i32: 1>} : vector<1x4x2x128xi32>
    %13 = vector.broadcast %11 : vector<1x1x2x128xi32> to vector<1x4x2x128xi32>
    %14 = arith.cmpi eq, %12, %13 : vector<1x4x2x128xi32>
    %cst_9 = arith.constant 0.000000e+00 : f32
    %15 = vector.broadcast %cst_9 : f32 to vector<1x4x2x128xf32>
    %16 = arith.select %14, %3, %15 : vector<1x4x2x128xi1>, vector<1x4x2x128xf32>
    %cst_10 = arith.constant dense<0.000000e+00> : vector<1x2x128xf32>
    %17 = vector.multi_reduction <add>, %16, %cst_10 [1] : vector<1x4x2x128xf32> to vector<1x2x128xf32>
    %18 = vector.shape_cast %17 : vector<1x2x128xf32> to vector<1x1x2x128xf32>
    %19 = math.log %10 : vector<1x1x2x128xf32>
    %20 = arith.addf %19, %5 : vector<1x1x2x128xf32>
    %21 = arith.subf %20, %18 : vector<1x1x2x128xf32>
    %c0_11 = arith.constant 0 : index
    %c0_12 = arith.constant 0 : index
    %c0_13 = arith.constant 0 : index
    %c0_14 = arith.constant 0 : index
    %22 = vector.load %arg5[%c0_11, %c0_12, %c0_13, %c0_14] : memref<1x1x2x128xf32, #tpu.memory_space<vmem>>, vector<1x1x2x128xf32>
    %23 = arith.addf %22, %21 : vector<1x1x2x128xf32>
    %c0_15 = arith.constant 0 : index
    %c0_16 = arith.constant 0 : index
    %c0_17 = arith.constant 0 : index
    %c0_18 = arith.constant 0 : index
    %24 = vector.load %arg5[%c0_15, %c0_16, %c0_17, %c0_18] : memref<1x1x2x128xf32, #tpu.memory_space<vmem>>, vector<1x1x2x128xf32>
    tpu.vector_store %arg5[%c0_15, %c0_16, %c0_17, %c0_18], %23 {strides = array<i32>} : memref<1x1x2x128xf32, #tpu.memory_space<vmem>>, vector<1x1x2x128xf32>,
    return
  }
  func.func @transform_0(%arg0: i32, %arg1: i32, %arg2: i32) -> (i32, i32, i32, i32) {
    %c1_i32 = arith.constant 1 : i32
    %0 = arith.muli %arg1, %c1_i32 : i32
    %1 = arith.addi %0, %arg2 : i32
    %c0_i32 = arith.constant 0 : i32
    %2 = arith.minsi %1, %c0_i32 : i32
    %c0_i32_0 = arith.constant 0 : i32
    %c0_i32_1 = arith.constant 0 : i32
    %c0_i32_2 = arith.constant 0 : i32
    return %arg0, %c0_i32_0, %2, %c0_i32_1 : i32, i32, i32, i32
  }
  func.func @transform_1(%arg0: i32, %arg1: i32, %arg2: i32) -> (i32, i32, i32, i32) {
    %c1_i32 = arith.constant 1 : i32
    %0 = arith.muli %arg1, %c1_i32 : i32
    %1 = arith.addi %0, %arg2 : i32
    %c0_i32 = arith.constant 0 : i32
    %2 = arith.minsi %1, %c0_i32 : i32
    %c0_i32_0 = arith.constant 0 : i32
    %c0_i32_1 = arith.constant 0 : i32
    %c0_i32_2 = arith.constant 0 : i32
    return %arg0, %c0_i32_0, %2, %c0_i32_1 : i32, i32, i32, i32
  }
  func.func @transform_2(%arg0: i32, %arg1: i32, %arg2: i32) -> (i32, i32, i32, i32) {
    %c1_i32 = arith.constant 1 : i32
    %0 = arith.muli %arg0, %c1_i32 : i32
    %1 = arith.addi %0, %arg1 : i32
    %c0_i32 = arith.constant 0 : i32
    %c0_i32_0 = arith.constant 0 : i32
    %c0_i32_1 = arith.constant 0 : i32
    %c0_i32_2 = arith.constant 0 : i32
    return %1, %c0_i32, %c0_i32_0, %c0_i32_1 : i32, i32, i32, i32
  }
}

</mosaic_0001>

<llo_original>
// kernel: tpu_custom_call.1
$region0: #{tpu_custom_call.1}
  #allocation0 [shape = 'u32[]', space=smem, size = 0x4, offset = 0x4, fixed_abs, tag = 'smem constant byte address 0x4 - core index']
  #allocation1 [shape = 'u32[144,128]{1,0:T(1,128)}', space=vmem, size = 0x12000, scoped, tag = 'internal scratch']
  %s0 = inlined_call_operand.hbm [shape: f32[2,4,2,128], index: 0, kind: input, shape index: {}]
  %s1 = inlined_call_operand.hbm [shape: s32[2,1,2,128], index: 1, kind: input, shape index: {}]
  %s2 = inlined_call_operand.hbm [shape: f32[2,1,2,128], index: 2, kind: output, shape index: {}]
  %s3 = sld [smem:[#allocation0]]
  $region53: #{tpu_custom_call.1} parent=0
    _
  %s5 = ssub.s32 1, %s3
  %s6 = scalar_select 0, %s5, %s3
  $region1: #{tpu_custom_call.1} parent=0
    #allocation2 [shape = 'u8[8192]{0}', space=vmem, size = 0x2000, scoped, tag = 'input window, operand 0']
    #allocation3 [shape = 's32[2]{0}', space=sflag, size = 0x8, scoped, tag = 'scoped memory for tpu_custom_call.1']
    #allocation4 [shape = 's32[2]{0}', space=sflag, size = 0x8, scoped, tag = 'scoped memory for tpu_custom_call.1']
    #allocation5 [shape = 'u8[2048]{0}', space=vmem, size = 0x800, scoped, tag = 'input window, operand 1']
    #allocation6 [shape = 's32[2]{0}', space=sflag, size = 0x8, scoped, tag = 'scoped memory for tpu_custom_call.1']
    #allocation7 [shape = 'u8[2048]{0}', space=vmem, size = 0x800, scoped, tag = 'output window, operand 0']
    %7 = vsyncpa [#allocation3], 0
    %s8 = scalar_lea.sflag [#allocation3], 1
    %9 = vsyncpa %s8, 0
    %10 = vsyncpa [#allocation6], 0
    %s11 = scalar_lea.sflag [#allocation6], 1
    %12 = vsyncpa %s11, 0
    %13 = vsyncpa [#allocation4], 0
    %s14 = scalar_lea.sflag [#allocation4], 1
    %15 = vsyncpa %s14, 0
    loop: start=0, step=1, limit=4
    $region2: #{tpu_custom_call.1} parent=1 // loop_pre_header
      _
    $region3: #{tpu_custom_call.1} parent=1 // loop_header
      %s17 = sphi 0, %s21
      %p18 = scmp.ge.s32.totalorder %s17, 4
      %s24 = sphi 0, %s43
      %s25 = sphi 0, %s39
      %s26 = sphi 0, %s35
      %s27 = sphi 0, %s24
      %s28 = sphi 0, %s25
      %s29 = sphi 0, %s26
      %s30 = sphi 0, %s27
      %s31 = sphi 0, %s28
      %s32 = sphi 0, %s29
      %s54 = sphi 0, %s56
      %s57 = sphi 0, %s54
      %s58 = sphi 0, %s57
      %s74 = sphi 0, %s58
      %s88 = sphi 0, %s90
      %s91 = sphi 0, %s88
      %s92 = sphi 0, %s91
      %s108 = sphi 0, %s92
      %s116 = sphi 0, %s118
      %s119 = sphi 0, %s116
      %s120 = sphi 0, %s119
      %s136 = sphi 0, %s120
    $region4: #{tpu_custom_call.1} parent=1 // loop_header_branch
      %20 = sbr.rel (%p18) target = $region8
    $region5: #{tpu_custom_call.1} parent=1 // loop_body
      %s22 = ssub.s32 %s17, 1
      %s23 = ssub.s32 %s17, 2
      %s33 = sadd.s32 1, %s26
      %p34 = scmp.ge.s32.totalorder %s33, 1
      %s35 = scalar_select %p34, 0, %s33
      %s36 = sadd.s32 1, %s25
      %s37 = scalar_select %p34, %s36, %s25
      %p38 = scmp.ge.s32.totalorder %s37, 1
      %s39 = scalar_select %p38, 0, %s37
      %s40 = sadd.s32 1, %s24
      %s41 = scalar_select %p38, %s40, %s24
      %p42 = scmp.ge.s32.totalorder %s41, 2
      %s43 = scalar_select %p42, 0, %s41
      %s44 = sadd.s32 %s25, %s26
      %p45 = scmp.lt.s32.totalorder %s44, 0
      %s46 = scalar_select %p45, %s44, 0
      %s47 = sadd.s32 %s39, %s35
      %p48 = scmp.lt.s32.totalorder %s47, 0
      %s49 = scalar_select %p48, %s47, 0
      %s50 = ssub.s32 %s24, %s43
      %s51 = ssub.s32 %s46, %s49
      %s52 = sor.u32 %s50, %s51
      %p53 = scmp.eq.s32.totalorder %s52, 0
      %s55 = sadd.s32 %s54, 1
      %s56 = scalar_select %p53, %s54, %s55
      %p59 = pneg %p53
      %p60 = scmp.eq.s32.totalorder %s17, 1
      %p61 = por %p59, %p60
      %p62 = scmp.ne.s32.totalorder %s54, %s57
      %p63 = scmp.eq.s32.totalorder %s17, 0
      %p64 = por %p62, %p63
      %p65 = scmp.ne.s32.totalorder %s54, %s57
      %p66 = scmp.eq.s32.totalorder %s22, 1
      %p67 = por %p65, %p66
      %p68 = scmp.ne.s32.totalorder %s57, %s58
      %p69 = scmp.eq.s32.totalorder %s22, 0
      %p70 = por %p68, %p69
      %p71 = scmp.ne.s32.totalorder %s57, %s58
      %p72 = scmp.eq.s32.totalorder %s23, 1
      %p73 = por %p71, %p72
      %p75 = scmp.ne.s32.totalorder %s58, %s74
      %p76 = scmp.eq.s32.totalorder %s23, 0
      %p77 = por %p75, %p76
      %s78 = sadd.s32 %s25, %s26
      %p79 = scmp.lt.s32.totalorder %s78, 0
      %s80 = scalar_select %p79, %s78, 0
      %s81 = sadd.s32 %s39, %s35
      %p82 = scmp.lt.s32.totalorder %s81, 0
      %s83 = scalar_select %p82, %s81, 0
      %s84 = ssub.s32 %s24, %s43
      %s85 = ssub.s32 %s80, %s83
      %s86 = sor.u32 %s84, %s85
      %p87 = scmp.eq.s32.totalorder %s86, 0
      %s89 = sadd.s32 %s88, 1
      %s90 = scalar_select %p87, %s88, %s89
      %p93 = pneg %p87
      %p94 = scmp.eq.s32.totalorder %s17, 1
      %p95 = por %p93, %p94
      %p96 = scmp.ne.s32.totalorder %s88, %s91
      %p97 = scmp.eq.s32.totalorder %s17, 0
      %p98 = por %p96, %p97
      %p99 = scmp.ne.s32.totalorder %s88, %s91
      %p100 = scmp.eq.s32.totalorder %s22, 1
      %p101 = por %p99, %p100
      %p102 = scmp.ne.s32.totalorder %s91, %s92
      %p103 = scmp.eq.s32.totalorder %s22, 0
      %p104 = por %p102, %p103
      %p105 = scmp.ne.s32.totalorder %s91, %s92
      %p106 = scmp.eq.s32.totalorder %s23, 1
      %p107 = por %p105, %p106
      %p109 = scmp.ne.s32.totalorder %s92, %s108
      %p110 = scmp.eq.s32.totalorder %s23, 0
      %p111 = por %p109, %p110
      %s112 = sadd.s32 %s24, %s25
      %s113 = sadd.s32 %s43, %s39
      %s114 = ssub.s32 %s112, %s113
      %p115 = scmp.eq.s32.totalorder %s114, 0
      %s117 = sadd.s32 %s116, 1
      %s118 = scalar_select %p115, %s116, %s117
      %p121 = pneg %p115
      %p122 = scmp.eq.s32.totalorder %s17, 1
      %p123 = por %p121, %p122
      %p124 = scmp.ne.s32.totalorder %s116, %s119
      %p125 = scmp.eq.s32.totalorder %s17, 0
      %p126 = por %p124, %p125
      %p127 = scmp.ne.s32.totalorder %s116, %s119
      %p128 = scmp.eq.s32.totalorder %s22, 1
      %p129 = por %p127, %p128
      %p130 = scmp.ne.s32.totalorder %s119, %s120
      %p131 = scmp.eq.s32.totalorder %s22, 0
      %p132 = por %p130, %p131
      %p133 = scmp.ne.s32.totalorder %s119, %s120
      %p134 = scmp.eq.s32.totalorder %s23, 1
      %p135 = por %p133, %p134
      %p137 = scmp.ne.s32.totalorder %s120, %s136
      %p138 = scmp.eq.s32.totalorder %s23, 0
      %p139 = por %p137, %p138
      %p140 = scmp.le.s32.totalorder 1, %s17
      %p141 = scmp.lt.s32.totalorder %s17, 3
      %p142 = pnand %p140, %p141
      %p143 = pneg %p142
      // Predicated region
      $region9: #{tpu_custom_call.1} parent=5 // pred_check
        _
      $region10: #{tpu_custom_call.1} parent=5 // pred_check_branch
        %145 = sbr.rel (%p142) target = $region12
      $region11: #{tpu_custom_call.1} parent=5 // pred_region
        %s146 = ssub.s32 %s17, 1
      $region12: #{tpu_custom_call.1} parent=5 // pred_fallthru
        _
      %p147 = scmp.lt.s32.totalorder %s17, 2
      // Predicated region
      $region13: #{tpu_custom_call.1} parent=5 // pred_check
        %p148 = pneg %p147
      $region14: #{tpu_custom_call.1} parent=5 // pred_check_branch
        %150 = sbr.rel (%p148) target = $region16
      $region15: #{tpu_custom_call.1} parent=5 // pred_region
        // Predicated region
        $region17: #{tpu_custom_call.1} parent=15 // pred_check
          %p151 = pneg %p64
        $region18: #{tpu_custom_call.1} parent=15 // pred_check_branch
          %153 = sbr.rel (%p151) target = $region20
        $region19: #{tpu_custom_call.1} parent=15 // pred_region
          %s154 = sand.u32 %s54, 1
          %s155 = scalar_lea.sflag [#allocation3], %s154
          %s156 = sand.u32 %s54, 1
          %s157 = smul.addr %s156, 8
          %s158 = scalar_lea.vmem [#allocation2], %s157
          %s159 = sadd.s32 %s25, %s26
          %p160 = scmp.lt.s32.totalorder %s159, 0
          %s161 = scalar_select %p160, %s159, 0
          %s163 = ssub.s32 128, 128
          %164 = vsyncadd %s155, %s163
          %s165 = smul.addr %s24, 4
          %s166 = sadd.s32 %s161, %s165
          %s167 = smul.addr %s166, 32
          %s168 = scalar_lea.hbm %s0, %s167
          %s169 = sshll.u32 %s158, 4
          %s170 = int_to_ptr.vmem [resolvable:$true] %s169
          %175 = dma.hbm_to_vmem [thread:$0]  %s168, 128, %s170, %s155, 32, 32, 2
        $region20: #{tpu_custom_call.1} parent=15 // pred_fallthru
          _
        // Predicated region
        $region21: #{tpu_custom_call.1} parent=15 // pred_check
          %p176 = pneg %p98
        $region22: #{tpu_custom_call.1} parent=15 // pred_check_branch
          %178 = sbr.rel (%p176) target = $region24
        $region23: #{tpu_custom_call.1} parent=15 // pred_region
          %s179 = sand.u32 %s88, 1
          %s180 = scalar_lea.sflag [#allocation6], %s179
          %s181 = sand.u32 %s88, 1
          %s182 = smul.addr %s181, 2
          %s183 = scalar_lea.vmem [#allocation5], %s182
          %s184 = sadd.s32 %s25, %s26
          %p185 = scmp.lt.s32.totalorder %s184, 0
          %s186 = scalar_select %p185, %s184, 0
          %s188 = ssub.s32 32, 32
          %189 = vsyncadd %s180, %s188
          %s190 = sadd.s32 %s186, %s24
          %s191 = smul.addr %s190, 32
          %s192 = scalar_lea.hbm %s1, %s191
          %s194 = sshll.u32 %s183, 4
          %s195 = int_to_ptr.vmem [resolvable:$true] %s194
          %197 = dma.hbm_to_vmem [thread:$0]  %s192, 32, %s195, %s180
        $region24: #{tpu_custom_call.1} parent=15 // pred_fallthru
          _
      $region16: #{tpu_custom_call.1} parent=5 // pred_fallthru
        _
      %p198 = scmp.le.s32.totalorder 1, %s17
      %p199 = scmp.lt.s32.totalorder %s17, 3
      %p200 = pnand %p198, %p199
      %p201 = pneg %p200
      // Predicated region
      $region25: #{tpu_custom_call.1} parent=5 // pred_check
        _
      $region26: #{tpu_custom_call.1} parent=5 // pred_check_branch
        %203 = sbr.rel (%p200) target = $region28
      $region27: #{tpu_custom_call.1} parent=5 // pred_region
        %s204 = ssub.s32 %s17, 1
        %s205 = sand.u32 %s57, 1
        %s206 = scalar_lea.sflag [#allocation3], %s205
        %s207 = sand.u32 %s57, 1
        %s208 = smul.addr %s207, 8
        %s209 = scalar_lea.vmem [#allocation2], %s208
        // Predicated region
        $region29: #{tpu_custom_call.1} parent=27 // pred_check
          %p210 = pneg %p70
        $region30: #{tpu_custom_call.1} parent=27 // pred_check_branch
          %212 = sbr.rel (%p210) target = $region32
        $region31: #{tpu_custom_call.1} parent=27 // pred_region
          %213 = dma.done %s206, 128
        $region32: #{tpu_custom_call.1} parent=27 // pred_fallthru
          _
        %s214 = sand.u32 %s91, 1
        %s215 = scalar_lea.sflag [#allocation6], %s214
        %s216 = sand.u32 %s91, 1
        %s217 = smul.addr %s216, 2
        %s218 = scalar_lea.vmem [#allocation5], %s217
        // Predicated region
        $region33: #{tpu_custom_call.1} parent=27 // pred_check
          %p219 = pneg %p104
        $region34: #{tpu_custom_call.1} parent=27 // pred_check_branch
          %221 = sbr.rel (%p219) target = $region36
        $region35: #{tpu_custom_call.1} parent=27 // pred_region
          %222 = dma.done %s215, 32
        $region36: #{tpu_custom_call.1} parent=27 // pred_fallthru
          _
        %s223 = sand.u32 %s57, 1
        %s224 = scalar_lea.sflag [#allocation3], %s223
        %s225 = sand.u32 %s57, 1
        %s226 = smul.addr %s225, 8
        %s227 = scalar_lea.vmem [#allocation2], %s226
        %p228 = pneg %p70
        %p229 = pneg %p67
        %s230 = sand.u32 %s91, 1
        %s231 = scalar_lea.sflag [#allocation6], %s230
        %s232 = sand.u32 %s91, 1
        %s233 = smul.addr %s232, 2
        %s234 = scalar_lea.vmem [#allocation5], %s233
        %p235 = pneg %p104
        %p236 = pneg %p101
        %p237 = pneg %p132
        %p238 = pneg %p129
        %s239 = sand.u32 %s119, 1
        %s240 = scalar_lea.sflag [#allocation4], %s239
        %s241 = sand.u32 %s119, 1
        %s242 = smul.addr %s241, 2
        %s243 = scalar_lea.vmem [#allocation7], %s242
        %s244 = sadd.s32 %s28, %s29
        %p245 = scmp.lt.s32.totalorder %s244, 0
        %s246 = scalar_select %p245, %s244, 0
        %s247 = sadd.s32 %s28, %s29
        %p248 = scmp.lt.s32.totalorder %s247, 0
        %s249 = scalar_select %p248, %s247, 0
        %s250 = sadd.s32 %s27, %s28
        %p251 = scmp.eq.s32.totalorder %s29, 0
        // Predicated region
        $region37: #{tpu_custom_call.1} parent=27 // pred_check
          %p252 = pneg %p251
        $region38: #{tpu_custom_call.1} parent=27 // pred_check_branch
          %254 = sbr.rel (%p252) target = $region40
        $region39: #{tpu_custom_call.1} parent=27 // pred_region
          %255 = vst [vmem:[%s243] sm:$0x3] 0.0
        $region40: #{tpu_custom_call.1} parent=27 // pred_fallthru
          _
        %v256 = vld [vmem:[%s209] sm:$0x3]
        %v257 = vld [vmem:[%s209 + $0x2] sm:$0x3]
        %v258 = vld [vmem:[%s209 + $0x4] sm:$0x3]
        %v259 = vld [vmem:[%s209 + $0x6] sm:$0x3]
        %vm260 = vcmask 1041408
        %v261 = vsel %vm260, %v256, -inf
        %v262 = vsel %vm260, %v257, -inf
        %v263 = vsel %vm260, %v258, -inf
        %v264 = vsel %vm260, %v259, -inf
        %v265 = vmax.f32 %v261, %v262
        %v266 = vmax.f32 %v263, %v264
        %v267 = vmax.f32 %v265, %v266
        %v268 = vsub.f32 %v256, %v267
        %v269 = vsub.f32 %v257, %v267
        %v270 = vsub.f32 %v258, %v267
        %v271 = vsub.f32 %v259, %v267
        %v272 = vmul.f32 %v268, 1.442695
        %v273 = vpow.pop %v272
        %v274 = vmul.f32 %v269, 1.442695
        %v275 = vpow.pop %v274
        %v276 = vmul.f32 %v270, 1.442695
        %v277 = vpow.pop %v276
        %v278 = vmul.f32 %v271, 1.442695
        %v279 = vpow.pop %v278
        %v280 = vsel %vm260, %v273, 0.0
        %v281 = vsel %vm260, %v275, 0.0
        %v282 = vadd.f32 %v280, %v281
        %v283 = vsel %vm260, %v277, 0.0
        %v284 = vadd.f32 %v282, %v283
        %v285 = vsel %vm260, %v279, 0.0
        %v286 = vadd.f32 %v284, %v285
        %v287 = vld [vmem:[%s218] sm:$0x3]
        %vm288 = vcmp.eq.s32.totalorder %v287, 0
        %vm289 = vcmp.eq.s32.totalorder %v287, 1
        %vm290 = vcmp.eq.s32.totalorder %v287, 2
        %vm291 = vcmp.eq.s32.totalorder %v287, 3
        %v292 = vsel %vm288, %v256, 0.0
        %v293 = vsel %vm289, %v257, 0.0
        %v294 = vsel %vm290, %v258, 0.0
        %v295 = vsel %vm291, %v259, 0.0
        %v296 = vsel %vm260, %v292, 0.0
        %v297 = vsel %vm260, %v293, 0.0
        %v298 = vadd.f32 %v296, %v297
        %v299 = vsel %vm260, %v294, 0.0
        %v300 = vadd.f32 %v298, %v299
        %v301 = vsel %vm260, %v295, 0.0
        %v302 = vadd.f32 %v300, %v301
        %v303 = vlog2.pop %v286
        %v304 = vmul.f32 %v303, 0.6931472
        %v305 = vadd.f32 %v304, %v267
        %v306 = vsub.f32 %v305, %v302
        %v307 = vld [vmem:[%s243] sm:$0x3]
        %v308 = vadd.f32 %v307, %v306
        %309 = vst [vmem:[%s243] sm:$0x3] %v308
        %s310 = sand.u32 %s119, 1
        %s311 = scalar_lea.sflag [#allocation4], %s310
        %s312 = sand.u32 %s119, 1
        %s313 = smul.addr %s312, 2
        %s314 = scalar_lea.vmem [#allocation7], %s313
        // Predicated region
        $region41: #{tpu_custom_call.1} parent=27 // pred_check
          %p315 = pneg %p129
        $region42: #{tpu_custom_call.1} parent=27 // pred_check_branch
          %317 = sbr.rel (%p315) target = $region44
        $region43: #{tpu_custom_call.1} parent=27 // pred_region
          %s318 = sadd.s32 %s27, %s28
          %s320 = ssub.s32 32, 32
          %321 = vsyncadd %s311, %s320
          %s322 = smul.addr %s318, 32
          %s323 = scalar_lea.hbm %s2, %s322
          %s325 = sshll.u32 %s314, 4
          %s326 = int_to_ptr.vmem [resolvable:$true] %s325
          %328 = dma.vmem_to_hbm [thread:$0]  %s326, 32, %s323, %s311
        $region44: #{tpu_custom_call.1} parent=27 // pred_fallthru
          _
      $region28: #{tpu_custom_call.1} parent=5 // pred_fallthru
        _
      %p329 = scmp.le.s32.totalorder 2, %s17
      // Predicated region
      $region45: #{tpu_custom_call.1} parent=5 // pred_check
        %p330 = pneg %p329
      $region46: #{tpu_custom_call.1} parent=5 // pred_check_branch
        %332 = sbr.rel (%p330) target = $region48
      $region47: #{tpu_custom_call.1} parent=5 // pred_region
        %s333 = ssub.s32 %s17, 2
        // Predicated region
        $region49: #{tpu_custom_call.1} parent=47 // pred_check
          %p334 = pneg %p135
        $region50: #{tpu_custom_call.1} parent=47 // pred_check_branch
          %336 = sbr.rel (%p334) target = $region52
        $region51: #{tpu_custom_call.1} parent=47 // pred_region
          %s337 = sand.u32 %s120, 1
          %s338 = scalar_lea.sflag [#allocation4], %s337
          %s339 = sand.u32 %s120, 1
          %s340 = smul.addr %s339, 2
          %s341 = scalar_lea.vmem [#allocation7], %s340
          %342 = dma.done %s338, 32
        $region52: #{tpu_custom_call.1} parent=47 // pred_fallthru
          _
      $region48: #{tpu_custom_call.1} parent=5 // pred_fallthru
        _
    $region6: #{tpu_custom_call.1} parent=1 // loop_footer
      %s21 = sadd.s32 1, %s17
    $region7: #{tpu_custom_call.1} parent=1 // loop_footer_branch
      %16 = sbr.rel target = $region3
    $region8: #{tpu_custom_call.1} parent=1 // loop_exit
      _
    %343 = vsyncpa [#allocation3], 1
    %s344 = scalar_lea.sflag [#allocation3], 1
    %345 = vsyncpa %s344, 1
    %346 = vsyncpa [#allocation6], 1
    %s347 = scalar_lea.sflag [#allocation6], 1
    %348 = vsyncpa %s347, 1
    %349 = vsyncpa [#allocation4], 1
    %s350 = scalar_lea.sflag [#allocation4], 1
    %351 = vsyncpa %s350, 1

</llo_original>
